<compile_context>
chip_gen: v6e
topology: v6e:2x2x1
jax: 0.10.0
libtpu: 0.0.40
codegen_flags: <defaults>
</compile_context>

<pallas_src>
import functools

import jax
import jax.numpy as jnp
from jax.experimental import pallas as pl
from jax.experimental.pallas import tpu as pltpu


def _round_up(v, mult):
    return ((v + mult - 1) // mult) * mult


def _classifier_kernel(x_ref, w_ref, b_ref, o_ref, *, tm, m_valid):
    # x_ref: (tm, H) streamed row tile       w_ref: (8, H) weight row replicated
    # b_ref: (1,) f32 in SMEM                o_ref: (1, tm) lane-dense f32 scores
    i = pl.program_id(0)

    # Contract H of both operands (x is the transposed-rhs, flash-attn q.k^T style):
    # (8, H) x (tm, H) -> (8, tm); all 8 rows identical.  f32 MXU accumulation.
    s = jax.lax.dot_general(
        w_ref[...], x_ref[...],
        dimension_numbers=(((1,), (1,)), ((), ())),
        preferred_element_type=jnp.float32,
    )
    s = s[0:1, :] + b_ref[0]                       # (1, tm) logits + bias, f32
    scores = jax.nn.sigmoid(s)                     # f32 epilogue

    # Mask padded tail columns (last partial block) so no NaN/Inf ever leaves the
    # kernel; they are sliced off in the wrapper anyway.
    col = i * tm + jax.lax.broadcasted_iota(jnp.int32, (1, tm), 1)
    scores = jnp.where(col < m_valid, scores, 0.0)

    o_ref[...] = scores.astype(o_ref.dtype)


def _pick_row_tile(m, h, itemsize, *, target_tile_bytes=8 * 1024 * 1024,
                   max_rows=32768):
    """Row tile sized by bytes; guarantees a >=2-block (preferably even) grid when
    M is large enough so the 'parallel' axis can shard across v7x's 2 TCs."""
    tm = target_tile_bytes // max(1, h * itemsize)
    tm = (tm // 128) * 128                     # lane-friendly multiple of 128
    tm = max(128, min(tm, max_rows))

    if m >= 256:
        # Cap so we always get at least 2 blocks (both v7x TensorCores busy).
        half = _round_up(-(-m // 2), 128)
        tm = min(tm, half)
        nb = -(-m // tm)
        if nb % 2 == 1 and nb <= 8:
            # Nudge to an even block count to avoid a 33-50% core imbalance.
            for nb_t in range(nb + 1, nb + 8, 2):
                tm_c = max(128, _round_up(-(-m // nb_t), 128))
                if (-(-m // tm_c)) % 2 == 0:
                    tm = min(tm, tm_c)
                    break
    else:
        # Tiny problem: a single block covering all (sublane-rounded) rows.
        tm = min(tm, _round_up(m, 8))
    return int(tm)


def classifier_forward(x, weight, bias, cls_mask=None, *,
                       compute_dtype=jnp.bfloat16,
                       target_tile_bytes=8 * 1024 * 1024):
    """x: [B, S, H], weight: [1, H], bias: [1] -> sent_scores [B, S] (float32).

    cls_mask is accepted but unused (matches the PyTorch forward)."""
    B, S, H = x.shape
    M = B * S
    in_dtype = jnp.dtype(compute_dtype)
    item = in_dtype.itemsize

    # bf16 streaming (halves HBM traffic); f32 accumulation happens in-kernel.
    x2 = x.reshape(M, H).astype(in_dtype)
    # Replicate the weight row to 8 sublanes for a clean MXU lhs.
    w8 = jnp.tile(weight.reshape(1, H).astype(in_dtype), (8, 1))
    b1 = bias.reshape(1).astype(jnp.float32)

    tm = _pick_row_tile(M, H, item, target_tile_bytes=target_tile_bytes)
    n_blocks = pl.cdiv(M, tm)
    m_pad = n_blocks * tm

    # VMEM budget derived from the actual footprint (double-buffered x tiles,
    # weight, output row, (8,tm) f32 matmul result) + margin for Mosaic scratch.
    # Default target keeps this ~20-24 MiB: well under v7x's 64 MiB per-TC VMEM.
    vmem_bytes = (2 * tm * H * item
                  + 2 * 8 * H * item
                  + 2 * tm * 4
                  + 8 * tm * 4
                  + 4 * 1024 * 1024)
    vmem_limit = max(int(vmem_bytes), 16 * 1024 * 1024)

    cost = pl.CostEstimate(
        flops=2 * M * H,
        transcendentals=M,
        bytes_accessed=M * H * item + M * 4 + 8 * H * item,
    )

    kernel = functools.partial(_classifier_kernel, tm=tm, m_valid=M)

    out = pl.pallas_call(
        kernel,
        out_shape=jax.ShapeDtypeStruct((1, m_pad), jnp.float32),
        grid=(n_blocks,),
        in_specs=[
            pl.BlockSpec((tm, H), lambda i: (i, 0)),            # streamed x row tile
            pl.BlockSpec((8, H), lambda i: (0, 0)),             # weight, VMEM-resident
            pl.BlockSpec(memory_space=pltpu.MemorySpace.SMEM),  # bias scalar
        ],
        out_specs=pl.BlockSpec((1, tm), lambda i: (0, i)),      # lane-dense scores row
        compiler_params=pltpu.CompilerParams(
            dimension_semantics=("parallel",),
            vmem_limit_bytes=vmem_limit,
        ),
        cost_estimate=cost,
    )(x2, w8, b1)

    # squeeze(-1) from the PyTorch forward + removal of tile padding.
    return out.reshape(m_pad)[:M].reshape(B, S)


if __name__ == "__main__":
    key = jax.random.PRNGKey(0)

    # --- Small shape consistent with the module -------------------------------
    B, S, H = 2, 8, 32
    kx, kw, kb, km = jax.random.split(key, 4)
    bound = 1.0 / jnp.sqrt(jnp.float32(H))
    weight = jax.random.uniform(kw, (1, H), jnp.float32, -bound, bound)
    bias = jax.random.uniform(kb, (1,), jnp.float32, -bound, bound)
    x = jax.random.normal(kx, (B, S, H), jnp.float32)
    cls_mask = (jax.random.uniform(km, (B, S)) > 0.5).astype(jnp.float32)  # unused, per reference

    ref = jax.nn.sigmoid(jnp.einsum("bsh,h->bs", x, weight[0]) + bias[0])

    # f32 streaming path: bit-tight tolerance.
    scores_f32 = jax.block_until_ready(
        classifier_forward(x, weight, bias, cls_mask, compute_dtype=jnp.float32))
    assert scores_f32.shape == (B, S)
    assert scores_f32.dtype == jnp.float32
    assert jnp.allclose(scores_f32, ref, atol=1e-5, rtol=1e-5)

    # Default bf16 streaming path: f32 accumulation keeps probabilities close.
    scores_bf16 = jax.block_until_ready(classifier_forward(x, weight, bias, cls_mask))
    assert scores_bf16.dtype == jnp.float32
    assert jnp.allclose(scores_bf16, ref, atol=2e-2, rtol=2e-2)

    # --- Larger, non-divisible shape: multi-block grid + masked padded tail ----
    B2, S2, H2 = 4, 333, 256
    kx2, kw2, kb2 = jax.random.split(jax.random.PRNGKey(0), 3)
    bound2 = 1.0 / jnp.sqrt(jnp.float32(H2))
    weight2 = jax.random.uniform(kw2, (1, H2), jnp.float32, -bound2, bound2)
    bias2 = jax.random.uniform(kb2, (1,), jnp.float32, -bound2, bound2)
    x2 = jax.random.normal(kx2, (B2, S2, H2), jnp.float32)
    ref2 = jax.nn.sigmoid(jnp.einsum("bsh,h->bs", x2, weight2[0]) + bias2[0])

    # Default byte-sized tiles (>=2 blocks since M=1332 >= 256).
    scores2 = jax.block_until_ready(classifier_forward(x2, weight2, bias2, None))
    assert scores2.shape == (B2, S2)
    assert jnp.all(jnp.isfinite(scores2))
    assert jnp.allclose(scores2, ref2, atol=2e-2, rtol=2e-2)

    # Small tile target to force a many-block grid with a partial last block.
    scores2b = jax.block_until_ready(
        classifier_forward(x2, weight2, bias2, None, target_tile_bytes=96 * 1024))
    assert jnp.allclose(scores2b, ref2, atol=2e-2, rtol=2e-2)

    print("KERNEL_OK")
</pallas_src>

<mosaic_0001>
module attributes {stable_mosaic.version = 11 : i64} {
  func.func @_classifier_kernel(%arg0: i32, %arg1: memref<16x32xf32, #tpu.memory_space<vmem>>, %arg2: memref<8x32xf32, #tpu.memory_space<vmem>>, %arg3: memref<1xf32, #tpu.memory_space<smem>>, %arg4: memref<1x16xf32, #tpu.memory_space<vmem>>) attributes {dimension_semantics = [#tpu.dimension_semantics<parallel>], iteration_bounds = array<i64: 1>, scalar_prefetch = 0 : i64, scratch_operands = 0 : i64, tpu.core_type = #tpu.core_type<tc>, window_params = [{transform_indices = @transform_0, window_bounds = array<i64: 16, 32>}, {pipeline_mode = #tpu.pipeline_mode<synchronous>, transform_indices = @transform_1, window_bounds = array<i64: 8, 32>}, {transform_indices = @transform_2, window_bounds = array<i64: 1>}, {transform_indices = @transform_3, window_bounds = array<i64: 1, 16>}]} {
    %c0 = arith.constant 0 : index
    %c0_0 = arith.constant 0 : index
    %0 = vector.load %arg2[%c0, %c0_0] : memref<8x32xf32, #tpu.memory_space<vmem>>, vector<8x32xf32>
    %c0_1 = arith.constant 0 : index
    %c0_2 = arith.constant 0 : index
    %1 = vector.load %arg1[%c0_1, %c0_2] : memref<16x32xf32, #tpu.memory_space<vmem>>, vector<16x32xf32>
    %cst = arith.constant dense<0.000000e+00> : vector<8x16xf32>
    %2 = tpu.matmul %0, %1, %cst {dimension_numbers = #tpu.dot_dimension_numbers<[1], [1], [0], [0], [0, 0, 1, 0], [], []>} : vector<8x32xf32>, vector<16x32xf32>, vector<8x16xf32> -> vector<8x16xf32>
    %3 = vector.extract_strided_slice %2 {offsets = [0, 0], sizes = [1, 16], strides = [1, 1]} : vector<8x16xf32> to vector<1x16xf32>
    %c0_3 = arith.constant 0 : index
    %4 = memref.load %arg3[%c0_3] : memref<1xf32, #tpu.memory_space<smem>>
    %5 = vector.broadcast %4 : f32 to vector<1x16xf32>
    %6 = arith.addf %3, %5 : vector<1x16xf32>
    %7 = arith.negf %6 : vector<1x16xf32>
    %8 = math.exp %7 : vector<1x16xf32>
    %cst_4 = arith.constant 1.000000e+00 : f32
    %9 = vector.broadcast %cst_4 : f32 to vector<1x16xf32>
    %10 = arith.addf %9, %8 : vector<1x16xf32>
    %11 = arith.divf %9, %10 : vector<1x16xf32>
    %c16_i32 = arith.constant 16 : i32
    %12 = arith.muli %arg0, %c16_i32 : i32
    %13 = tpu.iota {dimensions = array<i32: 1>} : vector<1x16xi32>
    %14 = vector.broadcast %12 : i32 to vector<1x16xi32>
    %15 = arith.addi %14, %13 : vector<1x16xi32>
    %c16_i32_5 = arith.constant 16 : i32
    %16 = vector.broadcast %c16_i32_5 : i32 to vector<1x16xi32>
    %17 = arith.cmpi slt, %15, %16 : vector<1x16xi32>
    %cst_6 = arith.constant 0.000000e+00 : f32
    %18 = vector.broadcast %cst_6 : f32 to vector<1x16xf32>
    %19 = arith.select %17, %11, %18 : vector<1x16xi1>, vector<1x16xf32>
    %c0_7 = arith.constant 0 : index
    %c0_8 = arith.constant 0 : index
    %20 = vector.load %arg4[%c0_7, %c0_8] : memref<1x16xf32, #tpu.memory_space<vmem>>, vector<1x16xf32>
    tpu.vector_store %arg4[%c0_7, %c0_8], %19 {strides = array<i32>} : memref<1x16xf32, #tpu.memory_space<vmem>>, vector<1x16xf32>,
    return
  }
  func.func @transform_0(%arg0: i32) -> (i32, i32) {
    %c0_i32 = arith.constant 0 : i32
    %c0_i32_0 = arith.constant 0 : i32
    return %arg0, %c0_i32 : i32, i32
  }
  func.func @transform_1(%arg0: i32) -> (i32, i32) {
    %c0_i32 = arith.constant 0 : i32
    %c0_i32_0 = arith.constant 0 : i32
    %c0_i32_1 = arith.constant 0 : i32
    return %c0_i32, %c0_i32_0 : i32, i32
  }
  func.func @transform_2(%arg0: i32) -> i32 {
    %c0_i32 = arith.constant 0 : i32
    %c0_i32_0 = arith.constant 0 : i32
    return %c0_i32 : i32
  }
  func.func @transform_3(%arg0: i32) -> (i32, i32) {
    %c0_i32 = arith.constant 0 : i32
    %c0_i32_0 = arith.constant 0 : i32
    return %c0_i32, %arg0 : i32, i32
  }
}

</mosaic_0001>

<llo_original>
// kernel: tpu_custom_call.1
$region0: #{tpu_custom_call.1}
  #allocation0 [shape = 'u32[]', space=smem, size = 0x4, offset = 0x4, fixed_abs, tag = 'smem constant byte address 0x4 - core index']
  #allocation1 [shape = 'u32[144,128]{1,0:T(1,128)}', space=vmem, size = 0x12000, scoped, tag = 'internal scratch']
  #allocation2 [shape = 'f32[1]{0:T(128)S(6)}', space=smem, size = 0x200, scoped, tag = 'scoped memory for tpu_custom_call.1']
  %s0 = inlined_call_operand.hbm [shape: f32[16,32], index: 0, kind: input, shape index: {}]
  %s1 = inlined_call_operand.hbm [shape: f32[8,32], index: 1, kind: input, shape index: {}]
  %s2 = inlined_call_operand.<no memory space> [shape: f32[1], index: 2, kind: input, shape index: {}]
  %s3 = inlined_call_operand.hbm [shape: f32[1,16], index: 3, kind: output, shape index: {}]
  %s4 = sld [smem:[#allocation0]]
  $region30: #{tpu_custom_call.1} parent=0
    _
  %s6 = ssub.s32 1, %s4
  %s7 = scalar_select 0, %s6, %s4
  %8 = sst [smem:[#allocation2]] %s2
  $region1: #{tpu_custom_call.1} parent=0
    #allocation3 [shape = 'u8[8192]{0}', space=vmem, size = 0x2000, scoped, tag = 'input window, operand 0, single buffered']
    #allocation4 [shape = 's32[1]{0}', space=sflag, size = 0x4, scoped, tag = 'scoped memory for tpu_custom_call.1']
    #allocation5 [shape = 's32[1]{0}', space=sflag, size = 0x4, scoped, tag = 'scoped memory for tpu_custom_call.1']
    #allocation6 [shape = 'u8[4096]{0}', space=vmem, size = 0x1000, scoped, tag = 'input window, operand 1, single buffered']
    #allocation7 [shape = 's32[1]{0}', space=sflag, size = 0x4, scoped, tag = 'scoped memory for tpu_custom_call.1']
    #allocation8 [shape = 'u8[512]{0}', space=vmem, size = 0x400, scoped, tag = 'output window, operand 0, single buffered']
    %9 = vsyncpa [#allocation4], 0
    %10 = vsyncpa [#allocation7], 0
    %11 = vsyncpa [#allocation5], 0
    // Predicated region
    $region2: #{tpu_custom_call.1} parent=1 // pred_check
      _
    $region3: #{tpu_custom_call.1} parent=1 // pred_check_branch
      %13 = sbr.rel (0) target = $region5
    $region4: #{tpu_custom_call.1} parent=1 // pred_region
      %s15 = ssub.s32 256, 256
      %16 = vsyncadd [#allocation4], %s15
      %s17 = sshll.u32 [#allocation3], 4
      %s18 = int_to_ptr.vmem [resolvable:$true] %s17
      %23 = dma.hbm_to_vmem [thread:$0]  %s0, 256, %s18, [#allocation4], 128, 128, 8
    $region5: #{tpu_custom_call.1} parent=1 // pred_fallthru
      _
    // Predicated region
    $region6: #{tpu_custom_call.1} parent=1 // pred_check
      _
    $region7: #{tpu_custom_call.1} parent=1 // pred_check_branch
      %25 = sbr.rel (0) target = $region9
    $region8: #{tpu_custom_call.1} parent=1 // pred_region
      %s27 = ssub.s32 128, 128
      %28 = vsyncadd [#allocation7], %s27
      %s30 = sshll.u32 [#allocation6], 4
      %s31 = int_to_ptr.vmem [resolvable:$true] %s30
      %33 = dma.hbm_to_vmem [thread:$0]  %s1, 128, %s31, [#allocation7]
    $region9: #{tpu_custom_call.1} parent=1 // pred_fallthru
      _
    // Predicated region
    $region10: #{tpu_custom_call.1} parent=1 // pred_check
      _
    $region11: #{tpu_custom_call.1} parent=1 // pred_check_branch
      %35 = sbr.rel (0) target = $region13
    $region12: #{tpu_custom_call.1} parent=1 // pred_region
      _
    $region13: #{tpu_custom_call.1} parent=1 // pred_fallthru
      _
    // Predicated region
    $region14: #{tpu_custom_call.1} parent=1 // pred_check
      _
    $region15: #{tpu_custom_call.1} parent=1 // pred_check_branch
      %37 = sbr.rel (0) target = $region17
    $region16: #{tpu_custom_call.1} parent=1 // pred_region
      %38 = dma.done [#allocation4], 256
    $region17: #{tpu_custom_call.1} parent=1 // pred_fallthru
      _
    // Predicated region
    $region18: #{tpu_custom_call.1} parent=1 // pred_check
      _
    $region19: #{tpu_custom_call.1} parent=1 // pred_check_branch
      %40 = sbr.rel (0) target = $region21
    $region20: #{tpu_custom_call.1} parent=1 // pred_region
      %41 = dma.done [#allocation7], 128
    $region21: #{tpu_custom_call.1} parent=1 // pred_fallthru
      _
    %v42 = vld [vmem:[#allocation6] sm:$0xff]
    %v43 = vld [vmem:[#allocation3] sm:$0xff]
    %v44 = vld [vmem:[#allocation3 + $0x8] sm:$0xff]
    %vm45 = vcmask 261120
    %v47 = vsel %vm45, %v42, 0
    %v50 = vsel %vm45, %v43, 0
    %v53 = vsel %vm45, %v44, 0
    %55 = vmatprep.subr.mxu0 0.0
    %56 = vmatpush1.xpose.msra.mxu0 0.0
    %57 = vmatprep.subr.mxu0 0.0
    %58 = vmatpush1.xpose.msra.mxu0 0.0
    %59 = vmatprep.subr.mxu0 0.0
    %60 = vmatpush1.xpose.msra.mxu0 0.0
    %61 = vmatprep.subr.mxu0 0.0
    %62 = vmatpush1.xpose.msra.mxu0 0.0
    %63 = vmatprep.subr.mxu0 0.0
    %64 = vmatpush1.xpose.msra.mxu0 0.0
    %65 = vmatprep.subr.mxu0 0.0
    %66 = vmatpush1.xpose.msra.mxu0 0.0
    %67 = vmatprep.subr.mxu0 0.0
    %68 = vmatpush1.xpose.msra.mxu0 0.0
    %69 = vmatprep.subr.mxu0 0.0
    %70 = vmatpush1.xpose.msra.mxu0 0.0
    %71 = vmatprep.subr.mxu0 0.0
    %72 = vmatpush1.xpose.msra.mxu0 0.0
    %73 = vmatprep.subr.mxu0 0.0
    %74 = vmatpush1.xpose.msra.mxu0 0.0
    %75 = vmatprep.subr.mxu0 0.0
    %76 = vmatpush1.xpose.msra.mxu0 0.0
    %77 = vmatprep.subr.mxu0 0.0
    %78 = vmatpush1.xpose.msra.mxu0 0.0
    %79 = vmatprep.subr.mxu0 0.0
    %80 = vmatpush1.xpose.msra.mxu0 0.0
    %81 = vmatprep.subr.mxu0 0.0
    %82 = vmatpush1.xpose.msra.mxu0 0.0
    %83 = vmatprep.subr.mxu0 0.0
    %84 = vmatpush1.xpose.msra.mxu0 %v53
    %85 = vmatprep.subr.mxu0 0.0
    %86 = vmatpush1.xpose.msra.mxu0 %v50
    %87 = vmatprep.subr.mxu0 0.0
    %88 = vmatpush2.xpose.msra.mxu0 0.0
    %89 = vmatprep.subr.mxu0 0.0
    %90 = vmatpush2.xpose.msra.mxu0 0.0
    %91 = vmatprep.subr.mxu0 0.0
    %92 = vmatpush2.xpose.msra.mxu0 0.0
    %93 = vmatprep.subr.mxu0 0.0
    %94 = vmatpush2.xpose.msra.mxu0 0.0
    %95 = vmatprep.subr.mxu0 0.0
    %96 = vmatpush2.xpose.msra.mxu0 0.0
    %97 = vmatprep.subr.mxu0 0.0
    %98 = vmatpush2.xpose.msra.mxu0 0.0
    %99 = vmatprep.subr.mxu0 0.0
    %100 = vmatpush2.xpose.msra.mxu0 0.0
    %101 = vmatprep.subr.mxu0 0.0
    %102 = vmatpush2.xpose.msra.mxu0 0.0
    %103 = vmatprep.subr.mxu0 0.0
    %104 = vmatpush2.xpose.msra.mxu0 0.0
    %105 = vmatprep.subr.mxu0 0.0
    %106 = vmatpush2.xpose.msra.mxu0 0.0
    %107 = vmatprep.subr.mxu0 0.0
    %108 = vmatpush2.xpose.msra.mxu0 0.0
    %109 = vmatprep.subr.mxu0 0.0
    %110 = vmatpush2.xpose.msra.mxu0 0.0
    %111 = vmatprep.subr.mxu0 0.0
    %112 = vmatpush2.xpose.msra.mxu0 0.0
    %113 = vmatprep.subr.mxu0 0.0
    %114 = vmatpush2.xpose.msra.mxu0 0.0
    %115 = vmatprep.subr.mxu0 0.0
    %116 = vmatpush2.xpose.msra.mxu0 0.0
    %117 = vmatprep.subr.mxu0 0.0
    %118 = vmatpush2.xpose.msra.mxu0 0.0
    %119 = vmatprep.mubr.f32.mxu0 0.0
    %120 = vmatmul.mubr.f32.gmra.mxu0 %v47
    %v121 = vpop.f32.mrf.mxu0
    %v122 = vadd.f32 0.0, %v121
    %v123 = vpop.f32.mrf.mxu0
    %124 = vdwg.mxu0
    %s125 = sld [smem:[#allocation2]]
    %v126 = vstv %s125
    %v127 = vadd.f32 %v122, %v126
    %v128 = vxor.u32 %v127, 2147483648
    %v129 = vmul.f32 %v128, 1.442695
    %v130 = vpow.pop %v129
    %v131 = vadd.f32 %v130, 1.0
    %v132 = vrcp.pop %v131
    %v133 = vmul.f32 1.0, %v132
    %s134 = smul.u32 0, 16
    %v135 = vlaneseq
    %v136 = vand.u32 %v135, 127
    %v137 = vstv %s134
    %v138 = vadd.s32 %v137, %v136
    %vm139 = vcmp.lt.s32.totalorder %v138, 16
    %v140 = vsel %vm139, %v133, 0.0
    %vm141 = vcmask 122880
    %142 = vst.msk [vmem:[#allocation8] sm:$0x1] %vm141, %v140
    // Predicated region
    $region22: #{tpu_custom_call.1} parent=1 // pred_check
      _
    $region23: #{tpu_custom_call.1} parent=1 // pred_check_branch
      %144 = sbr.rel (0) target = $region25
    $region24: #{tpu_custom_call.1} parent=1 // pred_region
      %s146 = ssub.s32 16, 16
      %147 = vsyncadd [#allocation5], %s146
      %s149 = sshll.u32 [#allocation8], 4
      %s150 = int_to_ptr.vmem [resolvable:$true] %s149
      %152 = dma.vmem_to_hbm [thread:$0]  %s150, 16, %s3, [#allocation5]
    $region25: #{tpu_custom_call.1} parent=1 // pred_fallthru
      _
    // Predicated region
    $region26: #{tpu_custom_call.1} parent=1 // pred_check
      _
    $region27: #{tpu_custom_call.1} parent=1 // pred_check_branch
      %154 = sbr.rel (0) target = $region29
    $region28: #{tpu_custom_call.1} parent=1 // pred_region
      %155 = dma.done [#allocation5], 16
    $region29: #{tpu_custom_call.1} parent=1 // pred_fallthru
      _
    %156 = vsyncpa [#allocation4], 1
    %157 = vsyncpa [#allocation7], 1
    %158 = vsyncpa [#allocation5], 1

</llo_original>
